<compile_context>
chip_gen: v7x
topology: tpu7x:2x2x1
jax: 0.10.0
libtpu: 0.0.40
codegen_flags: <defaults>
</compile_context>

<pallas_src>
import functools

import jax
import jax.numpy as jnp
from jax.experimental import pallas as pl
from jax.experimental.pallas import tpu as pltpu


# ----------------------------------------------------------------------------
# Kernels
# ----------------------------------------------------------------------------

def _eca_kernel_single(scales_ref, x_ref, o_ref):
    """Fast path: the whole H*W extent fits in one block (common ECA case)."""
    w_eff = scales_ref[0]          # conv weight with 1/(H*W) folded in
    bias = scales_ref[1]
    s = jnp.sum(x_ref[...], axis=-1, keepdims=True, dtype=jnp.float32)
    o_ref[...] = jax.nn.sigmoid(w_eff * s + bias).astype(o_ref.dtype)


def _eca_kernel_chunked(scales_ref, x_ref, o_ref, acc_ref, *, hw_total, hw_chunk):
    """Large H*W: streaming reduction over a chunked spatial axis."""
    k = pl.program_id(1)
    nk = pl.num_programs(1)

    @pl.when(k == 0)
    def _():
        acc_ref[...] = jnp.zeros_like(acc_ref)

    def _accum(x):
        # f32 accumulation without upcasting the whole tile in VMEM.
        acc_ref[...] += jnp.sum(x, axis=-1, keepdims=True, dtype=jnp.float32)

    if hw_total % hw_chunk != 0:
        # Only the trailing chunk has out-of-range lane columns; keep the hot
        # loop mask-free and gate the iota/compare/select to the last k-step.
        @pl.when(k < nk - 1)
        def _():
            _accum(x_ref[...])

        @pl.when(k == nk - 1)
        def _():
            x = x_ref[...]
            col = jax.lax.broadcasted_iota(jnp.int32, x.shape, 1) + k * hw_chunk
            _accum(jnp.where(col < hw_total, x, jnp.zeros_like(x)))
    else:
        _accum(x_ref[...])

    @pl.when(k == nk - 1)
    def _():
        w_eff = scales_ref[0]
        bias = scales_ref[1]
        o_ref[...] = jax.nn.sigmoid(w_eff * acc_ref[...] + bias).astype(o_ref.dtype)


# ----------------------------------------------------------------------------
# Tiling / budgets
# ----------------------------------------------------------------------------

def _round_up(x, m):
    return (x + m - 1) // m * m


def _sublane_multiple(dtype):
    # 8 for f32, 16 for bf16, 32 for int8 (vreg sublane packing).
    return max(8, 32 // jnp.dtype(dtype).itemsize)


def _vmem_capacity_bytes():
    try:
        info = pltpu.get_tpu_info()
        cap = getattr(info, "vmem_capacity_bytes", None)
        if cap:
            return int(cap)
    except Exception:
        pass
    return 64 * 1024 * 1024  # conservative (v7x per-TC VMEM)


def _budgets(tile_budget_bytes):
    """(per-input-block byte budget, vmem_limit_bytes) sized from the chip."""
    vmem_cap = _vmem_capacity_bytes()
    if vmem_cap >= 128 * 1024 * 1024:               # v5e / v6e
        vmem_limit = 64 * 1024 * 1024
    else:                                           # v7x: 64 MiB VMEM / TC
        vmem_limit = min(48 * 1024 * 1024, (vmem_cap * 3) // 4)
    budget = 8 * 1024 * 1024 if tile_budget_bytes is None else int(tile_budget_bytes)
    # Triple-buffered input block + scratch/output must stay under the limit.
    budget = min(budget, vmem_limit // 4)
    return budget, vmem_limit


def _choose_tiles(bc, hw, dtype, tile_budget):
    """Pick (row_tile, hw_chunk) so one PADDED input block ~= tile_budget."""
    itemsize = jnp.dtype(dtype).itemsize
    sub = _sublane_multiple(dtype)
    hw_padded = _round_up(hw, 128)                  # real lane footprint

    if hw_padded * sub * itemsize <= tile_budget:
        hw_chunk = hw                               # full dim -> no 128-div needed
        lane_width = hw_padded
    else:
        hw_chunk = max(128, (tile_budget // (sub * itemsize)) // 128 * 128)
        lane_width = hw_chunk

    tm = tile_budget // (lane_width * itemsize)
    tm = max(sub, (tm // sub) * sub)
    tm = min(tm, _round_up(bc, sub))
    # Keep >= ~4 row blocks when there are enough rows so the "parallel" axis
    # can shard across both v7x TensorCores (and megacore on v6e).
    if bc >= 2 * sub:
        tm = min(tm, max(sub, _round_up(pl.cdiv(bc, 4), sub)))
    return tm, hw_chunk


def _input_spec(block_shape, index_map, n_buffers):
    if n_buffers and n_buffers > 2 and hasattr(pl, "Buffered"):
        try:
            return pl.BlockSpec(block_shape, index_map,
                                pipeline_mode=pl.Buffered(n_buffers))
        except TypeError:
            pass
    return pl.BlockSpec(block_shape, index_map)


# ----------------------------------------------------------------------------
# Wrapper
# ----------------------------------------------------------------------------

def eca_forward(x, conv_weight, conv_bias, *, tile_budget_bytes=None):
    """x: (B, C, H, W). conv_weight: (1,1,1), conv_bias: (1,). Returns (B, C)."""
    B, C, H, W = x.shape
    BC, HW = B * C, H * W
    x2 = x.reshape(BC, HW)
    itemsize = jnp.dtype(x.dtype).itemsize

    tile_budget, vmem_limit = _budgets(tile_budget_bytes)
    tm, hw_chunk = _choose_tiles(BC, HW, x.dtype, tile_budget)

    # Fold the 1/(H*W) mean scale into the conv weight once; ship (w_eff, b)
    # as a single scalar-prefetch SMEM array.
    scales = jnp.stack(
        [
            conv_weight.reshape(()).astype(jnp.float32) / jnp.float32(HW),
            conv_bias.reshape(()).astype(jnp.float32),
        ]
    )

    cost = pl.CostEstimate(
        flops=BC * HW + 2 * BC,
        transcendentals=BC,
        bytes_accessed=BC * HW * itemsize + BC * itemsize + 8,
    )

    if hw_chunk == HW:
        # ---- single-chunk fast path (typical ECA shapes) ----
        grid = (pl.cdiv(BC, tm),)
        out = pl.pallas_call(
            _eca_kernel_single,
            out_shape=jax.ShapeDtypeStruct((BC, 1), x.dtype),
            grid_spec=pltpu.PrefetchScalarGridSpec(
                num_scalar_prefetch=1,
                grid=grid,
                in_specs=[pl.BlockSpec((tm, HW), lambda i, s: (i, 0))],
                out_specs=pl.BlockSpec((tm, 1), lambda i, s: (i, 0)),
            ),
            compiler_params=pltpu.CompilerParams(
                dimension_semantics=("parallel",),
                vmem_limit_bytes=vmem_limit,
            ),
            cost_estimate=cost,
        )(scales, x2)
    else:
        # ---- chunked streaming-reduction path (large H*W) ----
        grid = (pl.cdiv(BC, tm), pl.cdiv(HW, hw_chunk))
        kernel = functools.partial(_eca_kernel_chunked, hw_total=HW, hw_chunk=hw_chunk)
        out = pl.pallas_call(
            kernel,
            out_shape=jax.ShapeDtypeStruct((BC, 1), x.dtype),
            grid_spec=pltpu.PrefetchScalarGridSpec(
                num_scalar_prefetch=1,
                grid=grid,
                in_specs=[_input_spec((tm, hw_chunk), lambda i, k, s: (i, k), 3)],
                out_specs=pl.BlockSpec((tm, 1), lambda i, k, s: (i, 0)),
                scratch_shapes=[pltpu.VMEM((tm, 1), jnp.float32)],
            ),
            compiler_params=pltpu.CompilerParams(
                dimension_semantics=("parallel", "arbitrary"),
                vmem_limit_bytes=vmem_limit,
            ),
            cost_estimate=cost,
        )(scales, x2)

    return out.reshape(B, C)


def eca_reference(x, conv_weight, conv_bias):
    gap = jnp.mean(x.astype(jnp.float32), axis=(2, 3))  # (B, C)
    y = conv_weight.reshape(()) * gap + conv_bias.reshape(())
    return jax.nn.sigmoid(y).astype(x.dtype)


if __name__ == "__main__":
    key = jax.random.PRNGKey(0)
    kx, kw, kb, kx2 = jax.random.split(key, 4)

    # Conv1d(1, 1, kernel_size=1) params (PyTorch default init: U(-1, 1) since
    # fan_in = in_channels * kernel_size = 1).
    conv_weight = jax.random.uniform(kw, (1, 1, 1), minval=-1.0, maxval=1.0)
    conv_bias = jax.random.uniform(kb, (1,), minval=-1.0, maxval=1.0)

    # 1) Module-typical small shape -> single-chunk fast path.
    B, C, H, W = 2, 4, 16, 16
    x = jax.random.normal(kx, (B, C, H, W), dtype=jnp.float32)
    out = jax.block_until_ready(eca_forward(x, conv_weight, conv_bias))
    ref = eca_reference(x, conv_weight, conv_bias)
    assert out.shape == (B, C)
    assert jnp.allclose(out, ref, atol=1e-5, rtol=1e-5), "single-chunk mismatch"

    # 2) Exercise the chunked + masked-trailing-chunk path at small shapes by
    #    forcing a tiny block budget (H*W = 289 -> chunks of 128, last partial).
    Hb, Wb = 17, 17
    xb = jax.random.normal(kx2, (B, C, Hb, Wb), dtype=jnp.float32)
    outb = jax.block_until_ready(
        eca_forward(xb, conv_weight, conv_bias, tile_budget_bytes=4096)
    )
    refb = eca_reference(xb, conv_weight, conv_bias)
    assert jnp.allclose(outb, refb, atol=1e-5, rtol=1e-5), "chunked mismatch"

    print("KERNEL_OK")
</pallas_src>

<mosaic_0001>
module attributes {stable_mosaic.version = 11 : i64} {
  func.func @_eca_kernel_single(%arg0: i32, %arg1: memref<2xf32, #tpu.memory_space<smem>>, %arg2: memref<8x256xf32, #tpu.memory_space<vmem>>, %arg3: memref<8x1xf32, #tpu.memory_space<vmem>>) attributes {dimension_semantics = [#tpu.dimension_semantics<parallel>], iteration_bounds = array<i64: 1>, scalar_prefetch = 1 : i64, scratch_operands = 0 : i64, tpu.core_type = #tpu.core_type<tc>, window_params = [{transform_indices = @transform_0, window_bounds = array<i64: 8, 256>}, {transform_indices = @transform_1, window_bounds = array<i64: 8, 1>}]} {
    %c0 = arith.constant 0 : index
    %0 = memref.load %arg1[%c0] : memref<2xf32, #tpu.memory_space<smem>>
    %c1 = arith.constant 1 : index
    %1 = memref.load %arg1[%c1] : memref<2xf32, #tpu.memory_space<smem>>
    %c0_0 = arith.constant 0 : index
    %c0_1 = arith.constant 0 : index
    %2 = vector.load %arg2[%c0_0, %c0_1] : memref<8x256xf32, #tpu.memory_space<vmem>>, vector<8x256xf32>
    %cst = arith.constant dense<0.000000e+00> : vector<8xf32>
    %3 = vector.multi_reduction <add>, %2, %cst [1] : vector<8x256xf32> to vector<8xf32>
    %4 = vector.shape_cast %3 : vector<8xf32> to vector<8x1xf32>
    %5 = vector.broadcast %0 : f32 to vector<8x1xf32>
    %6 = arith.mulf %5, %4 : vector<8x1xf32>
    %7 = vector.broadcast %1 : f32 to vector<8x1xf32>
    %8 = arith.addf %6, %7 : vector<8x1xf32>
    %9 = arith.negf %8 : vector<8x1xf32>
    %10 = math.exp %9 : vector<8x1xf32>
    %cst_2 = arith.constant 1.000000e+00 : f32
    %11 = vector.broadcast %cst_2 : f32 to vector<8x1xf32>
    %12 = arith.addf %11, %10 : vector<8x1xf32>
    %13 = arith.divf %11, %12 : vector<8x1xf32>
    %c0_3 = arith.constant 0 : index
    %c0_4 = arith.constant 0 : index
    %14 = vector.load %arg3[%c0_3, %c0_4] : memref<8x1xf32, #tpu.memory_space<vmem>>, vector<8x1xf32>
    tpu.vector_store %arg3[%c0_3, %c0_4], %13 {strides = array<i32>} : memref<8x1xf32, #tpu.memory_space<vmem>>, vector<8x1xf32>,
    return
  }
  func.func @transform_0(%arg0: i32, %arg1: memref<2xf32, #tpu.memory_space<smem>>) -> (i32, i32) {
    %c0_i32 = arith.constant 0 : i32
    %c0_i32_0 = arith.constant 0 : i32
    return %arg0, %c0_i32 : i32, i32
  }
  func.func @transform_1(%arg0: i32, %arg1: memref<2xf32, #tpu.memory_space<smem>>) -> (i32, i32) {
    %c0_i32 = arith.constant 0 : i32
    %c0_i32_0 = arith.constant 0 : i32
    return %arg0, %c0_i32 : i32, i32
  }
}

</mosaic_0001>

<llo_original>
// kernel: tpu_custom_call.1
$region0: #{tpu_custom_call.1}
  #allocation0 [shape = 'u32[]', space=smem, size = 0x4, offset = 0x4, fixed_abs, tag = 'smem constant byte address 0x4 - core index']
  #allocation1 [shape = 'u32[144,128]{1,0:T(1,128)}', space=vmem, size = 0x12000, scoped, tag = 'internal scratch']
  #allocation2 [shape = 's32[1]{0}', space=sflag, size = 0x4, scoped, tag = 'scoped memory for tpu_custom_call.1']
  #allocation3 [shape = 'u8[512]{0}', space=smem, size = 0x200, scoped, tag = 'prefetched SMEM operand 0']
  %s0 = inlined_call_operand.hbm [shape: f32[2], index: 0, kind: input, shape index: {}]
  %s1 = inlined_call_operand.hbm [shape: f32[8,256], index: 1, kind: input, shape index: {}]
  %s2 = inlined_call_operand.vmem [shape: f32[8,1], index: 2, kind: output, shape index: {}]
  %s3 = sld [smem:[#allocation0]]
  $region18: #{tpu_custom_call.1} parent=0
    _
  %s5 = ssub.s32 1, %s3
  %s6 = scalar_select 0, %s5, %s3
  %8 = dma.hbm_to_smem %s0, 16, [#allocation3], [#allocation2]
  %9 = dma.done [#allocation2], 16
  %10 = sfence
  $region1: #{tpu_custom_call.1} parent=0
    #allocation4 [shape = 'u8[8192]{0}', space=vmem, size = 0x2000, scoped, tag = 'input window, operand 1, single buffered']
    #allocation5 [shape = 's32[1]{0}', space=sflag, size = 0x4, scoped, tag = 'scoped memory for tpu_custom_call.1']
    %11 = vsyncpa [#allocation5], 0
    // Predicated region
    $region2: #{tpu_custom_call.1} parent=1 // pred_check
      _
    $region3: #{tpu_custom_call.1} parent=1 // pred_check_branch
      %13 = sbr.rel (0) target = $region5
    $region4: #{tpu_custom_call.1} parent=1 // pred_region
      %s15 = ssub.s32 256, 256
      %16 = vsyncadd [#allocation5], %s15
      %s18 = sshll.u32 [#allocation4], 4
      %s19 = int_to_ptr.vmem [resolvable:$true] %s18
      %21 = dma.hbm_to_vmem [thread:$0]  %s1, 256, %s19, [#allocation5]
    $region5: #{tpu_custom_call.1} parent=1 // pred_fallthru
      _
    // Predicated region
    $region6: #{tpu_custom_call.1} parent=1 // pred_check
      _
    $region7: #{tpu_custom_call.1} parent=1 // pred_check_branch
      %23 = sbr.rel (0) target = $region9
    $region8: #{tpu_custom_call.1} parent=1 // pred_region
      %24 = dma.done [#allocation5], 256
    $region9: #{tpu_custom_call.1} parent=1 // pred_fallthru
      _
    %s25 = sld [smem:[#allocation3]]
    %s26 = sld [smem:[#allocation3 + $0x1]]
    %v27 = vld [vmem:[#allocation4] sm:$0xff]
    %v28 = vld [vmem:[#allocation4 + $0x8] sm:$0xff]
    %v29 = vadd.f32 %v27, %v28
    %30 = vadd.xlane.f32.xlu0 %v29
    %v31 = vpop.xlane.xlu0 %30
    %v32 = vstv %s25
    %v33 = vmul.f32 %v32, %v31
    %v34 = vstv %s26
    %v35 = vadd.f32 %v33, %v34
    %v36 = vxor.u32 %v35, 2147483648
    %v37 = vmul.f32 %v36, 1.442695
    %v38 = vpow.pop %v37
    %v39 = vadd.f32 %v38, 1.0
    %v40 = vrcp.pop %v39
    %v41 = vmul.f32 1.0, %v40
    %vm42 = vcmask 7168
    %43 = vst.msk [vmem:[%s2] sm:$0xff] %vm42, %v41
    // Predicated region
    $region10: #{tpu_custom_call.1} parent=1 // pred_check
      _
    $region11: #{tpu_custom_call.1} parent=1 // pred_check_branch
      %45 = sbr.rel (0) target = $region13
    $region12: #{tpu_custom_call.1} parent=1 // pred_region
      _
    $region13: #{tpu_custom_call.1} parent=1 // pred_fallthru
      _
    // Predicated region
    $region14: #{tpu_custom_call.1} parent=1 // pred_check
      _
    $region15: #{tpu_custom_call.1} parent=1 // pred_check_branch
      %47 = sbr.rel (0) target = $region17
    $region16: #{tpu_custom_call.1} parent=1 // pred_region
      _
    $region17: #{tpu_custom_call.1} parent=1 // pred_fallthru
      _
    %48 = vsyncpa [#allocation5], 1

</llo_original>
